<compile_context>
chip_gen: v5e
topology: v5e:2x2
jax: 0.10.0
libtpu: 0.0.40
codegen_flags: <defaults>
</compile_context>

<pallas_src>
import jax
import jax.numpy as jnp
from jax.experimental import pallas as pl
from jax.experimental.pallas import tpu as pltpu

K1 = 1.2
B = 0.75

_LANES = 128
_SUBLANES = 8
_MAX_BLOCK_ROWS = 2048          # 2048 x 128 f32 = 1 MiB per input block


def _make_single_block_kernel(k1, rows, n, use_idf, mask_pad):
    """Single-grid-step kernel: no scratch, no carried accumulator."""
    k1_plus_1 = float(k1) + 1.0

    def kernel(c_ref, *refs):
        if use_idf:
            qtf_ref, idf_ref, out_ref = refs
        else:
            qtf_ref, out_ref = refs

        c = c_ref[0]                       # k1 * (1 - b + b*len(d)/avg_dl)
        qtf = qtf_ref[...]
        # divide -> reciprocal (exact; meets 1e-5 tolerance)
        scores = (qtf * k1_plus_1) * pl.reciprocal(qtf + c, approx=False)
        if use_idf:
            scores = idf_ref[...] * scores
        if mask_pad:
            # Discard host-padded lanes with a true select (robust to c == 0,
            # where 0 * reciprocal(0) would otherwise be NaN).
            row_ids = jax.lax.broadcasted_iota(jnp.int32, (rows, _LANES), 0)
            lane_ids = jax.lax.broadcasted_iota(jnp.int32, (rows, _LANES), 1)
            flat = row_ids * _LANES + lane_ids
            scores = jnp.where(flat < n, scores, 0.0)
        out_ref[0, 0] = jnp.sum(scores)

    return kernel


def _make_streaming_kernel(k1, block_rows, n, use_idf, mask_tail):
    """Gridded kernel with a single-vreg (8, 128) carried accumulator."""
    k1_plus_1 = float(k1) + 1.0
    groups = block_rows // _SUBLANES

    def kernel(c_ref, *refs):
        if use_idf:
            qtf_ref, idf_ref, out_ref, acc_ref = refs
        else:
            qtf_ref, out_ref, acc_ref = refs

        i = pl.program_id(0)
        last = pl.num_programs(0) - 1

        @pl.when(i == 0)
        def _init():
            acc_ref[...] = jnp.zeros_like(acc_ref)

        c = c_ref[0]
        qtf = qtf_ref[...]
        scores = (qtf * k1_plus_1) * pl.reciprocal(qtf + c, approx=False)
        if use_idf:
            scores = idf_ref[...] * scores

        if mask_tail:
            # Fast path for all steps except the last: no mask work at all.
            @pl.when(i != last)
            def _accumulate():
                acc_ref[...] += scores.reshape(groups, _SUBLANES, _LANES).sum(0)

            # Last step: mask overhang rows / padded lanes, accumulate, reduce.
            @pl.when(i == last)
            def _accumulate_masked_and_finalize():
                row_ids = jax.lax.broadcasted_iota(
                    jnp.int32, (block_rows, _LANES), 0)
                lane_ids = jax.lax.broadcasted_iota(
                    jnp.int32, (block_rows, _LANES), 1)
                flat = (i * block_rows + row_ids) * _LANES + lane_ids
                masked = jnp.where(flat < n, scores, 0.0)
                acc_ref[...] += masked.reshape(groups, _SUBLANES, _LANES).sum(0)
                out_ref[0, 0] = jnp.sum(acc_ref[...])
        else:
            acc_ref[...] += scores.reshape(groups, _SUBLANES, _LANES).sum(0)

            @pl.when(i == last)
            def _finalize():
                out_ref[0, 0] = jnp.sum(acc_ref[...])

    return kernel


def bm25_score(qtf, idf, doc_len, avg_dl, k1=K1, b=B, without_idf=False):
    """Pallas equivalent of _bm25.forward(qtf, idf, d, avg_dl, without_idf).

    `doc_len` plays the role of len(d) in the PyTorch module.
    Returns a scalar float32.
    """
    qtf = jnp.asarray(qtf, jnp.float32).reshape(-1)
    n = qtf.shape[0]

    # Pad only to the next lane multiple; padded entries are masked in the
    # last block inside the kernel.
    pad = (-n) % _LANES
    if pad:
        qtf = jnp.pad(qtf, (0, pad))
    rows = (n + pad) // _LANES
    qtf2 = qtf.reshape(rows, _LANES)

    use_idf = not without_idf
    if use_idf:
        idf = jnp.asarray(idf, jnp.float32).reshape(-1)
        if pad:
            idf = jnp.pad(idf, (0, pad))
        idf2 = idf.reshape(rows, _LANES)

    # Scalar part of the denominator, passed via SMEM (k1, b folded as consts).
    c = jnp.float32(k1) * (1.0 - float(b)
                           + float(b) * jnp.asarray(doc_len, jnp.float32)
                           / jnp.asarray(avg_dl, jnp.float32))
    c = jnp.reshape(c, (1,)).astype(jnp.float32)

    if rows <= _MAX_BLOCK_ROWS:
        # ---- single-block path (tiny / moderate n): no scratch, no carry ----
        kernel = _make_single_block_kernel(k1, rows, n, use_idf,
                                           mask_pad=(pad != 0))
        row_spec = pl.BlockSpec((rows, _LANES), lambda i: (0, 0))
        in_specs = [pl.BlockSpec(memory_space=pltpu.SMEM), row_spec]
        call_args = [c, qtf2]
        if use_idf:
            in_specs.append(row_spec)
            call_args.append(idf2)

        out = pl.pallas_call(
            kernel,
            out_shape=jax.ShapeDtypeStruct((1, 1), jnp.float32),
            grid=(1,),
            in_specs=in_specs,
            out_specs=pl.BlockSpec(memory_space=pltpu.SMEM),
            compiler_params=pltpu.CompilerParams(
                dimension_semantics=("arbitrary",),
                vmem_limit_bytes=16 * 1024 * 1024,
            ),
        )(*call_args)
        return out[0, 0]

    # ---- streamed multi-block path (large n) ----
    block_rows = _MAX_BLOCK_ROWS            # multiple of 8 sublanes
    num_blocks = pl.cdiv(rows, block_rows)
    # Mask needed iff the last block is not completely filled with real terms.
    mask_tail = n != num_blocks * block_rows * _LANES

    kernel = _make_streaming_kernel(k1, block_rows, n, use_idf, mask_tail)

    row_spec = pl.BlockSpec((block_rows, _LANES), lambda i: (i, 0))
    in_specs = [pl.BlockSpec(memory_space=pltpu.SMEM), row_spec]
    call_args = [c, qtf2]
    if use_idf:
        in_specs.append(row_spec)
        call_args.append(idf2)

    out = pl.pallas_call(
        kernel,
        out_shape=jax.ShapeDtypeStruct((1, 1), jnp.float32),
        grid=(num_blocks,),
        in_specs=in_specs,
        out_specs=pl.BlockSpec(memory_space=pltpu.SMEM),
        scratch_shapes=[pltpu.VMEM((_SUBLANES, _LANES), jnp.float32)],
        compiler_params=pltpu.CompilerParams(
            dimension_semantics=("arbitrary",),     # reduction (carried acc)
            vmem_limit_bytes=16 * 1024 * 1024,      # safe on v5e/v6e/v7x
        ),
    )(*call_args)
    return out[0, 0]


def bm25_ref(qtf, idf, doc_len, avg_dl, k1=K1, b=B, without_idf=False):
    """Pure-JAX reference mirroring the PyTorch forward exactly."""
    num = qtf * (k1 + 1.0)
    denom = qtf + k1 * (1.0 - b + b * doc_len / avg_dl)
    scores = (num / denom) if without_idf else idf * (num / denom)
    return jnp.sum(scores)


if __name__ == "__main__":
    key = jax.random.PRNGKey(0)
    k_qtf, k_idf, k_qtf2, k_idf2, k_qtf3, k_idf3 = jax.random.split(key, 6)

    # Module-consistent small case: 8 query terms, doc of 50 tokens, avg_dl 800.
    n_terms = 8
    qtf = jax.random.randint(k_qtf, (n_terms,), 1, 6).astype(jnp.float32)
    idf = jax.random.uniform(k_idf, (n_terms,), jnp.float32, 0.5, 5.0)
    doc_len = 50
    avg_dl = 800.0

    got = jax.block_until_ready(bm25_score(qtf, idf, doc_len, avg_dl))
    want = bm25_ref(qtf, idf, float(doc_len), avg_dl)
    assert jnp.allclose(got, want, rtol=1e-5, atol=1e-5), (got, want)

    # without_idf branch (idf stream skipped entirely inside the kernel).
    got2 = jax.block_until_ready(
        bm25_score(qtf, idf, doc_len, avg_dl, without_idf=True))
    want2 = bm25_ref(qtf, idf, float(doc_len), avg_dl, without_idf=True)
    assert jnp.allclose(got2, want2, rtol=1e-5, atol=1e-5), (got2, want2)

    # Larger term vector: exercises the multi-block streamed path including
    # the pl.when-gated mask on the partial last block.
    n_big = 300_000          # rows = 2344 -> 2 blocks of 2048 rows, partial tail
    qtf_b = jax.random.randint(k_qtf2, (n_big,), 0, 4).astype(jnp.float32)
    idf_b = jax.random.uniform(k_idf2, (n_big,), jnp.float32, 0.1, 8.0)

    got3 = jax.block_until_ready(bm25_score(qtf_b, idf_b, doc_len, avg_dl))
    want3 = bm25_ref(qtf_b, idf_b, float(doc_len), avg_dl)
    assert jnp.allclose(got3, want3, rtol=1e-4, atol=1e-3), (got3, want3)

    # Exact-multiple size: multi-block path with the maskless fast kernel.
    n_exact = 2 * _MAX_BLOCK_ROWS * _LANES        # 524288 -> 2 full blocks
    qtf_e = jax.random.randint(k_qtf3, (n_exact,), 0, 4).astype(jnp.float32)
    idf_e = jax.random.uniform(k_idf3, (n_exact,), jnp.float32, 0.1, 8.0)

    got4 = jax.block_until_ready(bm25_score(qtf_e, idf_e, doc_len, avg_dl))
    want4 = bm25_ref(qtf_e, idf_e, float(doc_len), avg_dl)
    assert jnp.allclose(got4, want4, rtol=1e-4, atol=1e-2), (got4, want4)

    print("KERNEL_OK")
</pallas_src>

<mosaic_0001>
module attributes {stable_mosaic.version = 11 : i64} {
  func.func @kernel(%arg0: i32, %arg1: memref<1xf32, #tpu.memory_space<smem>>, %arg2: memref<1x128xf32, #tpu.memory_space<vmem>>, %arg3: memref<1x128xf32, #tpu.memory_space<vmem>>, %arg4: memref<1x1xf32, #tpu.memory_space<smem>>) attributes {dimension_semantics = [#tpu.dimension_semantics<arbitrary>], iteration_bounds = array<i64: 1>, scalar_prefetch = 0 : i64, scratch_operands = 0 : i64, tpu.core_type = #tpu.core_type<tc>, window_params = [{transform_indices = @transform_0, window_bounds = array<i64: 1>}, {pipeline_mode = #tpu.pipeline_mode<synchronous>, transform_indices = @transform_1, window_bounds = array<i64: 1, 128>}, {pipeline_mode = #tpu.pipeline_mode<synchronous>, transform_indices = @transform_2, window_bounds = array<i64: 1, 128>}, {transform_indices = @transform_3, window_bounds = array<i64: 1, 1>}]} {
    %c0 = arith.constant 0 : index
    %0 = memref.load %arg1[%c0] : memref<1xf32, #tpu.memory_space<smem>>
    %c0_0 = arith.constant 0 : index
    %c0_1 = arith.constant 0 : index
    %1 = vector.load %arg2[%c0_0, %c0_1] : memref<1x128xf32, #tpu.memory_space<vmem>>, vector<1x128xf32>
    %cst = arith.constant 2.200000e+00 : f32
    %2 = vector.broadcast %cst : f32 to vector<1x128xf32>
    %3 = arith.mulf %1, %2 : vector<1x128xf32>
    %4 = vector.broadcast %0 : f32 to vector<1x128xf32>
    %5 = arith.addf %1, %4 : vector<1x128xf32>
    %6 = tpu.reciprocal %5 : vector<1x128xf32> -> vector<1x128xf32>
    %7 = arith.mulf %3, %6 : vector<1x128xf32>
    %c0_2 = arith.constant 0 : index
    %c0_3 = arith.constant 0 : index
    %8 = vector.load %arg3[%c0_2, %c0_3] : memref<1x128xf32, #tpu.memory_space<vmem>>, vector<1x128xf32>
    %9 = arith.mulf %8, %7 : vector<1x128xf32>
    %10 = tpu.iota {dimensions = array<i32: 0>} : vector<1x128xi32>
    %11 = tpu.iota {dimensions = array<i32: 1>} : vector<1x128xi32>
    %c128_i32 = arith.constant 128 : i32
    %12 = vector.broadcast %c128_i32 : i32 to vector<1x128xi32>
    %13 = arith.muli %10, %12 : vector<1x128xi32>
    %14 = arith.addi %13, %11 : vector<1x128xi32>
    %c8_i32 = arith.constant 8 : i32
    %15 = vector.broadcast %c8_i32 : i32 to vector<1x128xi32>
    %16 = arith.cmpi slt, %14, %15 : vector<1x128xi32>
    %cst_4 = arith.constant 0.000000e+00 : f32
    %17 = vector.broadcast %cst_4 : f32 to vector<1x128xf32>
    %18 = arith.select %16, %9, %17 : vector<1x128xi1>, vector<1x128xf32>
    %19 = vector.shape_cast %18 : vector<1x128xf32> to vector<1x1x128xf32>
    %cst_5 = arith.constant dense<0.000000e+00> : vector<1xf32>
    %20 = vector.multi_reduction <add>, %19, %cst_5 [1, 2] : vector<1x1x128xf32> to vector<1xf32>
    %21 = vector.shape_cast %20 : vector<1xf32> to vector<1x1x1xf32>
    %22 = vector.extract %21[0, 0, 0] : f32 from vector<1x1x1xf32>
    %c0_6 = arith.constant 0 : index
    %c0_7 = arith.constant 0 : index
    %23 = memref.load %arg4[%c0_6, %c0_7] : memref<1x1xf32, #tpu.memory_space<smem>>
    memref.store %22, %arg4[%c0_6, %c0_7] : memref<1x1xf32, #tpu.memory_space<smem>>
    return
  }
  func.func @transform_0(%arg0: i32) -> i32 {
    %c0_i32 = arith.constant 0 : i32
    %c0_i32_0 = arith.constant 0 : i32
    return %c0_i32 : i32
  }
  func.func @transform_1(%arg0: i32) -> (i32, i32) {
    %c0_i32 = arith.constant 0 : i32
    %c0_i32_0 = arith.constant 0 : i32
    %c0_i32_1 = arith.constant 0 : i32
    return %c0_i32, %c0_i32_0 : i32, i32
  }
  func.func @transform_2(%arg0: i32) -> (i32, i32) {
    %c0_i32 = arith.constant 0 : i32
    %c0_i32_0 = arith.constant 0 : i32
    %c0_i32_1 = arith.constant 0 : i32
    return %c0_i32, %c0_i32_0 : i32, i32
  }
  func.func @transform_3(%arg0: i32) -> (i32, i32) {
    %c0_i32 = arith.constant 0 : i32
    %c0_i32_0 = arith.constant 0 : i32
    %c0_i32_1 = arith.constant 0 : i32
    return %c0_i32, %c0_i32_0 : i32, i32
  }
}

</mosaic_0001>

<llo_original>
// kernel: tpu_custom_call.1
$region0: #{tpu_custom_call.1}
  #allocation0 [shape = 'u32[]', space=smem, size = 0x4, offset = 0x4, fixed_abs, tag = 'smem constant byte address 0x4 - core index']
  #allocation1 [shape = 'u32[72,128]{1,0:T(1,128)}', space=vmem, size = 0x9000, scoped, tag = 'internal scratch']
  #allocation2 [shape = 'f32[1]{0:T(128)S(6)}', space=smem, size = 0x200, scoped, tag = 'scoped memory for tpu_custom_call.1']
  %s0 = inlined_call_operand.<no memory space> [shape: f32[1], index: 0, kind: input, shape index: {}]
  %s1 = inlined_call_operand.vmem [shape: f32[1,128], index: 1, kind: input, shape index: {}]
  %s2 = inlined_call_operand.vmem [shape: f32[1,128], index: 2, kind: input, shape index: {}]
  %s3 = inlined_call_operand.hbm [shape: f32[1,1], index: 3, kind: output, shape index: {}]
  %s4 = sld [smem:[#allocation0]]
  $region22: #{tpu_custom_call.1} parent=0
    _
  %s6 = ssub.s32 1, %s4
  %s7 = scalar_select 0, %s6, %s4
  %8 = sst [smem:[#allocation2]] %s0
  $region1: #{tpu_custom_call.1} parent=0
    #allocation3 [shape = 'u8[512]{0}', space=smem, size = 0x200, scoped, tag = 'output window, operand 0, single buffered']
    #allocation4 [shape = 's32[1]{0}', space=sflag, size = 0x4, scoped, tag = 'scoped memory for tpu_custom_call.1']
    %9 = vsyncpa [#allocation4], 0
    // Predicated region
    $region2: #{tpu_custom_call.1} parent=1 // pred_check
      _
    $region3: #{tpu_custom_call.1} parent=1 // pred_check_branch
      %11 = sbr.rel (0) target = $region5
    $region4: #{tpu_custom_call.1} parent=1 // pred_region
      _
    $region5: #{tpu_custom_call.1} parent=1 // pred_fallthru
      _
    // Predicated region
    $region6: #{tpu_custom_call.1} parent=1 // pred_check
      _
    $region7: #{tpu_custom_call.1} parent=1 // pred_check_branch
      %13 = sbr.rel (0) target = $region9
    $region8: #{tpu_custom_call.1} parent=1 // pred_region
      _
    $region9: #{tpu_custom_call.1} parent=1 // pred_fallthru
      _
    // Predicated region
    $region10: #{tpu_custom_call.1} parent=1 // pred_check
      _
    $region11: #{tpu_custom_call.1} parent=1 // pred_check_branch
      %15 = sbr.rel (0) target = $region13
    $region12: #{tpu_custom_call.1} parent=1 // pred_region
      _
    $region13: #{tpu_custom_call.1} parent=1 // pred_fallthru
      _
    %s16 = sld [smem:[#allocation2]]
    %v17 = vld [vmem:[%s1] sm:$0x1]
    %v18 = vmul.f32 %v17, 2.2
    %v19 = vstv %s16
    %v20 = vadd.f32 %v17, %v19
    %v21 = vrcp.pop %v20
    %v22 = vmul.f32 %v20, %v21
    %v23 = vsub.f32 1.0, %v22
    %v24 = vmul.f32 %v21, %v23
    %v25 = vadd.f32 %v21, %v24
    %vm26 = vweird.f32 %v20
    %vm27 = vweird.f32 %v21
    %vm28 = vmor %vm26, %vm27
    %v29 = vsel %vm28, %v21, %v25
    %v30 = vand.u32 2147483647, %v20
    %vm31 = vcmp.eq.f32.partialorder %v30, 8.507059e+37
    %v32 = vand.u32 %v20, 2147483648
    %v33 = vor.u32 1.1754944e-38, %v32
    %v34 = vsel %vm31, %v33, %v29
    %v35 = vmul.f32 %v18, %v34
    %v36 = vld [vmem:[%s2] sm:$0x1]
    %v37 = vmul.f32 %v36, %v35
    %v38 = vlaneseq
    %v39 = vshrl.u32 %v38, 7
    %v40 = vlaneseq
    %v41 = vand.u32 %v40, 127
    %v42 = vmul.u32 %v39, 128
    %v43 = vadd.s32 %v42, %v41
    %vm44 = vcmp.lt.s32.totalorder %v43, 8
    %v45 = vsel %vm44, %v37, 0.0
    %vm46 = vcmask 1040384
    %v47 = vsel %vm46, %v45, 0.0
    %48 = vadd.xlane.f32.xlu0 %v47
    %v49 = vpop.xlane.xlu0 %48
    %v50 = vrot.slane %v49, 4
    %v51 = vadd.f32 %v49, %v50
    %v52 = vrot.slane %v51, 2
    %v53 = vadd.f32 %v51, %v52
    %v54 = vrot.slane %v53, 1
    %v55 = vadd.f32 %v53, %v54
    %s56 = vtos %v55
    %s57 = scalar_lea.smem [#allocation3], 0
    %58 = sst [smem:[%s57]] %s56
    // Predicated region
    $region14: #{tpu_custom_call.1} parent=1 // pred_check
      _
    $region15: #{tpu_custom_call.1} parent=1 // pred_check_branch
      %60 = sbr.rel (0) target = $region17
    $region16: #{tpu_custom_call.1} parent=1 // pred_region
      %62 = vsyncadd [#allocation4], 0
      %s64 = sshll.u32 %s3, 4
      %s65 = int_to_ptr.hbm [resolvable:$true] %s64
      %67 = dma.smem_to_hbm [#allocation3], 16, %s65, [#allocation4]
    $region17: #{tpu_custom_call.1} parent=1 // pred_fallthru
      _
    // Predicated region
    $region18: #{tpu_custom_call.1} parent=1 // pred_check
      _
    $region19: #{tpu_custom_call.1} parent=1 // pred_check_branch
      %69 = sbr.rel (0) target = $region21
    $region20: #{tpu_custom_call.1} parent=1 // pred_region
      %71 = dma.done [#allocation4], 16
    $region21: #{tpu_custom_call.1} parent=1 // pred_fallthru
      _
    %72 = sfence
    %73 = vsyncpa [#allocation4], 1

</llo_original>
